<compile_context>
chip_gen: v7x
topology: tpu7x:2x2x1
jax: 0.10.0
libtpu: 0.0.40
codegen_flags: <defaults>
</compile_context>

<pallas_src>
import jax
import jax.numpy as jnp
from jax.experimental import pallas as pl
from jax.experimental.pallas import tpu as pltpu


def rnn_forward(x, h0, w_ih, w_hh, b_ih, b_hh):
    """Single-layer tanh RNN forward. Returns (output, h_n) with PyTorch shapes."""
    seq_len, batch, input_size = x.shape
    num_layers, _, hidden_size = h0.shape
    assert num_layers == 1, "single-layer RNN only"

    I, H, B, S = input_size, hidden_size, batch, seq_len
    SB = S * B
    f32 = jnp.float32

    # ----------------- wrapper-side packing (cheap XLA layout work) -----------------
    def _padw(a, w):
        a = a.astype(f32)
        return jnp.pad(a, ((0, 0), (0, w - a.shape[1])))

    x2d = x.reshape(SB, I)                         # time-major rows
    xT = x2d.T                                     # (I, SB) column layout
    h0_2d = h0[0]                                  # (B, H)
    b = (b_ih + b_hh).astype(f32)                  # fused bias (H,)

    # Activation slab: x in both layouts -> one input DMA.
    Wx = max(I, SB)
    x_slab = jnp.concatenate([_padw(x2d, Wx), _padw(xT, Wx)], axis=0)   # (SB+I, Wx)

    # Parameter slab: weights (both orientations), fused bias (row + column
    # broadcast), h0 (row + column broadcast) -> one input DMA.
    Wp = max(I, H)
    b_row = b.reshape(1, H)
    b_colb = jnp.broadcast_to(b.reshape(H, 1), (H, H))
    h0_colb = jnp.broadcast_to(h0_2d[0].astype(f32).reshape(H, 1), (H, H))
    p_slab = jnp.concatenate(
        [
            _padw(w_ih.T, Wp),     # rows [0, I)            W_ih^T  (I, H)
            _padw(w_ih, Wp),       # rows [I, I+H)          W_ih    (H, I)
            _padw(w_hh, Wp),       # rows [I+H, I+2H)       W_hh    (H, H)
            _padw(w_hh.T, Wp),     # rows [I+2H, I+3H)      W_hh^T  (H, H)
            _padw(b_row, Wp),      # row  I+3H              bias row
            _padw(b_colb, Wp),     # rows [..+1, ..+1+H)    bias column-broadcast
            _padw(h0_2d, Wp),      # rows [.., ..+B)        h0 rows
            _padw(h0_colb, Wp),    # rows [.., ..+H)        h0 column-broadcast
        ],
        axis=0,
    )

    r_wih_t = 0
    r_wih = I
    r_whh = I + H
    r_whh_t = I + 2 * H
    r_brow = I + 3 * H
    r_bcol = r_brow + 1
    r_h0 = r_bcol + H
    r_h0c = r_h0 + B
    n_prows = r_h0c + H

    def kernel(xs_ref, p_ref, y_ref, xr_scr, xc_scr):
        # Loop-invariant parameter loads (static slices of the packed slab).
        wih_t = p_ref[r_wih_t:r_wih_t + I, 0:H]        # (I, H) = W_ih^T
        whh_t = p_ref[r_whh_t:r_whh_t + H, 0:H]        # (H, H) = W_hh^T
        w_hh = p_ref[r_whh:r_whh + H, 0:H]             # (H, H)
        b_row_k = p_ref[r_brow:r_brow + 1, 0:H]        # (1, H)

        x2d_k = xs_ref[0:SB, 0:I]                      # (SB, I)

        # Non-recurrent input projection for ALL timesteps: one MXU matmul,
        # staged into VMEM so per-step reads are plain vld's.
        xr_scr[...] = jnp.dot(x2d_k, wih_t, preferred_element_type=f32) + b_row_k

        if B == 1:
            # Column-layout projection (feeds the sublane-oriented copy of h).
            wih = p_ref[r_wih:r_wih + H, 0:I]          # (H, I)
            b_col = p_ref[r_bcol:r_bcol + H, 0:1]      # (H, 1)
            xT_k = xs_ref[SB:SB + I, 0:SB]             # (I, SB)
            xc_scr[...] = jnp.dot(wih, xT_k, preferred_element_type=f32) + b_col

            # Hidden state carried in BOTH layouts -> no per-step transpose:
            #   h_row  : (1, H)  values along lanes   (feeds rec_col and y)
            #   h_colb : (H, H)  values along sublanes, broadcast over lanes
            #                    (feeds rec_row)
            h_row = p_ref[r_h0:r_h0 + 1, 0:H]          # (1, H)
            h_colb = p_ref[r_h0c:r_h0c + H, 0:H]       # (H, H)
            ys = []
            for t in range(S):
                xp_row = xr_scr[t:t + 1, :]            # (1, H)
                xp_col = xc_scr[:, t:t + 1]            # (H, 1)
                # rec[j] = sum_k h_k * W_hh[j, k]  -- VPU multiply + XLU
                # reduce, produced in both orientations; no MXU round trip.
                rec_row = jnp.sum(h_colb * whh_t, axis=0, keepdims=True)   # (1, H)
                rec_col = jnp.sum(
                    jnp.broadcast_to(h_row, (H, H)) * w_hh,
                    axis=1, keepdims=True)                                 # (H, 1)
                h_row = jnp.tanh(xp_row + rec_row)                         # (1, H)
                h_col = jnp.tanh(xp_col + rec_col)                         # (H, 1)
                h_colb = jnp.broadcast_to(h_col, (H, H))
                ys.append(h_row)
        else:
            # General batch: batched matvec per step on the MXU.
            h = p_ref[r_h0:r_h0 + B, 0:H]              # (B, H)
            ys = []
            for t in range(S):
                xp = xr_scr[t * B:(t + 1) * B, :]
                h = jnp.tanh(xp + jnp.dot(h, whh_t, preferred_element_type=f32))
                ys.append(h)

        # One coalesced slab store for the whole output sequence.
        y_ref[...] = jnp.concatenate(ys, axis=0).astype(y_ref.dtype)

    grid_spec = pltpu.PrefetchScalarGridSpec(
        num_scalar_prefetch=0,
        grid=(1,),  # whole problem is VMEM-resident at this size
        in_specs=[
            pl.BlockSpec((SB + I, Wx), lambda i: (0, 0)),
            pl.BlockSpec((n_prows, Wp), lambda i: (0, 0)),
        ],
        out_specs=pl.BlockSpec((SB, H), lambda i: (0, 0)),
        scratch_shapes=[
            pltpu.VMEM((SB, H), f32),   # x projection, row layout
            pltpu.VMEM((H, SB), f32),   # x projection, column layout (batch==1)
        ],
    )

    y2d = pl.pallas_call(
        kernel,
        out_shape=jax.ShapeDtypeStruct((SB, H), x.dtype),
        grid_spec=grid_spec,
        compiler_params=pltpu.CompilerParams(
            dimension_semantics=("arbitrary",)),
    )(x_slab, p_slab)

    y = y2d.reshape(S, B, H)
    h_n = y2d[SB - B:].reshape(num_layers, B, H)   # last timestep == h_n
    return y, h_n


def rnn_reference(x, h0, w_ih, w_hh, b_ih, b_hh):
    """Pure-JAX reference with PyTorch RNN semantics."""
    def step(h, x_t):
        h_new = jnp.tanh(x_t @ w_ih.T + b_ih + h @ w_hh.T + b_hh)
        return h_new, h_new
    h_last, ys = jax.lax.scan(step, h0[0], x)
    return ys, h_last[None]


if __name__ == "__main__":
    # Module hyperparameters (from the PyTorch script).
    batch_size = 1
    hidden_size = 4
    input_size = 4
    num_layers = 1
    seq_len = 8

    key = jax.random.PRNGKey(0)
    k_x, k_h, k_wih, k_whh, k_bih, k_bhh = jax.random.split(key, 6)

    # Deterministic parameter init (matches PyTorch's U(-1/sqrt(H), 1/sqrt(H)) scheme).
    bound = 1.0 / (hidden_size ** 0.5)
    w_ih = jax.random.uniform(k_wih, (hidden_size, input_size), jnp.float32, -bound, bound)
    w_hh = jax.random.uniform(k_whh, (hidden_size, hidden_size), jnp.float32, -bound, bound)
    b_ih = jax.random.uniform(k_bih, (hidden_size,), jnp.float32, -bound, bound)
    b_hh = jax.random.uniform(k_bhh, (hidden_size,), jnp.float32, -bound, bound)

    # Example inputs: (seq, batch, input) and (num_layers, batch, hidden).
    x = jax.random.normal(k_x, (seq_len, batch_size, input_size), jnp.float32)
    h0 = jnp.zeros((num_layers, batch_size, hidden_size), jnp.float32)  # init_hidden()

    y, h_n = rnn_forward(x, h0, w_ih, w_hh, b_ih, b_hh)
    y = jax.block_until_ready(y)
    h_n = jax.block_until_ready(h_n)

    # Correctness check against pure-JAX reference.
    y_ref, h_ref = rnn_reference(x, h0, w_ih, w_hh, b_ih, b_hh)
    assert jnp.allclose(y, y_ref, atol=1e-5, rtol=1e-5), "output mismatch"
    assert jnp.allclose(h_n, h_ref, atol=1e-5, rtol=1e-5), "hidden mismatch"

    print("KERNEL_OK")
</pallas_src>

<mosaic_0001>
module attributes {stable_mosaic.version = 11 : i64} {
  func.func @kernel(%arg0: i32, %arg1: memref<12x8xf32, #tpu.memory_space<vmem>>, %arg2: memref<26x4xf32, #tpu.memory_space<vmem>>, %arg3: memref<8x4xf32, #tpu.memory_space<vmem>>, %arg4: memref<8x4xf32, #tpu.memory_space<vmem>>, %arg5: memref<4x8xf32, #tpu.memory_space<vmem>>) attributes {dimension_semantics = [#tpu.dimension_semantics<arbitrary>], iteration_bounds = array<i64: 1>, scalar_prefetch = 0 : i64, scratch_operands = 2 : i64, tpu.core_type = #tpu.core_type<tc>, window_params = [{pipeline_mode = #tpu.pipeline_mode<synchronous>, transform_indices = @transform_0, window_bounds = array<i64: 12, 8>}, {pipeline_mode = #tpu.pipeline_mode<synchronous>, transform_indices = @transform_1, window_bounds = array<i64: 26, 4>}, {pipeline_mode = #tpu.pipeline_mode<synchronous>, transform_indices = @transform_2, window_bounds = array<i64: 8, 4>}]} {
    %c0 = arith.constant 0 : index
    %c0_0 = arith.constant 0 : index
    %0 = vector.load %arg2[%c0, %c0_0] : memref<26x4xf32, #tpu.memory_space<vmem>>, vector<4x4xf32>
    %c12 = arith.constant 12 : index
    %c0_1 = arith.constant 0 : index
    %1 = vector.load %arg2[%c12, %c0_1] : memref<26x4xf32, #tpu.memory_space<vmem>>, vector<4x4xf32>
    %c8 = arith.constant 8 : index
    %c0_2 = arith.constant 0 : index
    %2 = vector.load %arg2[%c8, %c0_2] : memref<26x4xf32, #tpu.memory_space<vmem>>, vector<4x4xf32>
    %c16 = arith.constant 16 : index
    %c0_3 = arith.constant 0 : index
    %3 = vector.load %arg2[%c16, %c0_3] : memref<26x4xf32, #tpu.memory_space<vmem>>, vector<1x4xf32>
    %c0_4 = arith.constant 0 : index
    %c0_5 = arith.constant 0 : index
    %4 = vector.load %arg1[%c0_4, %c0_5] : memref<12x8xf32, #tpu.memory_space<vmem>>, vector<8x4xf32>
    %cst = arith.constant dense<0.000000e+00> : vector<8x4xf32>
    %5 = tpu.matmul %4, %0, %cst {dimension_numbers = #tpu.dot_dimension_numbers<[1], [0], [0], [1], [0, 0, 1, 1], [], []>} : vector<8x4xf32>, vector<4x4xf32>, vector<8x4xf32> -> vector<8x4xf32>
    %6 = vector.broadcast %3 : vector<1x4xf32> to vector<8x4xf32>
    %7 = arith.addf %5, %6 : vector<8x4xf32>
    %c0_6 = arith.constant 0 : index
    %c0_7 = arith.constant 0 : index
    %8 = vector.load %arg4[%c0_6, %c0_7] : memref<8x4xf32, #tpu.memory_space<vmem>>, vector<8x4xf32>
    tpu.vector_store %arg4[%c0_6, %c0_7], %7 {strides = array<i32>} : memref<8x4xf32, #tpu.memory_space<vmem>>, vector<8x4xf32>,
    %c4 = arith.constant 4 : index
    %c0_8 = arith.constant 0 : index
    %9 = vector.load %arg2[%c4, %c0_8] : memref<26x4xf32, #tpu.memory_space<vmem>>, vector<4x4xf32>
    %c17 = arith.constant 17 : index
    %c0_9 = arith.constant 0 : index
    %10 = vector.load %arg2[%c17, %c0_9] : memref<26x4xf32, #tpu.memory_space<vmem>>, vector<4x1xf32>
    %c8_10 = arith.constant 8 : index
    %c0_11 = arith.constant 0 : index
    %11 = vector.load %arg1[%c8_10, %c0_11] : memref<12x8xf32, #tpu.memory_space<vmem>>, vector<4x8xf32>
    %cst_12 = arith.constant dense<0.000000e+00> : vector<4x8xf32>
    %12 = tpu.matmul %9, %11, %cst_12 {dimension_numbers = #tpu.dot_dimension_numbers<[1], [0], [0], [1], [0, 0, 1, 1], [], []>} : vector<4x4xf32>, vector<4x8xf32>, vector<4x8xf32> -> vector<4x8xf32>
    %13 = vector.broadcast %10 : vector<4x1xf32> to vector<4x8xf32>
    %14 = arith.addf %12, %13 : vector<4x8xf32>
    %c0_13 = arith.constant 0 : index
    %c0_14 = arith.constant 0 : index
    %15 = vector.load %arg5[%c0_13, %c0_14] : memref<4x8xf32, #tpu.memory_space<vmem>>, vector<4x8xf32>
    tpu.vector_store %arg5[%c0_13, %c0_14], %14 {strides = array<i32>} : memref<4x8xf32, #tpu.memory_space<vmem>>, vector<4x8xf32>,
    %c21 = arith.constant 21 : index
    %c0_15 = arith.constant 0 : index
    %16 = vector.load %arg2[%c21, %c0_15] : memref<26x4xf32, #tpu.memory_space<vmem>>, vector<1x4xf32>
    %c22 = arith.constant 22 : index
    %c0_16 = arith.constant 0 : index
    %17 = vector.load %arg2[%c22, %c0_16] : memref<26x4xf32, #tpu.memory_space<vmem>>, vector<4x4xf32>
    %c0_17 = arith.constant 0 : index
    %c0_18 = arith.constant 0 : index
    %18 = vector.load %arg4[%c0_17, %c0_18] : memref<8x4xf32, #tpu.memory_space<vmem>>, vector<1x4xf32>
    %c0_19 = arith.constant 0 : index
    %c0_20 = arith.constant 0 : index
    %19 = vector.load %arg5[%c0_19, %c0_20] : memref<4x8xf32, #tpu.memory_space<vmem>>, vector<4x1xf32>
    %20 = arith.mulf %17, %1 : vector<4x4xf32>
    %cst_21 = arith.constant dense<0.000000e+00> : vector<4xf32>
    %21 = vector.multi_reduction <add>, %20, %cst_21 [0] : vector<4x4xf32> to vector<4xf32>
    %22 = vector.shape_cast %21 : vector<4xf32> to vector<1x4xf32>
    %23 = vector.shape_cast %16 : vector<1x4xf32> to vector<1x4xf32>
    %24 = vector.broadcast %23 : vector<1x4xf32> to vector<4x4xf32>
    %25 = arith.mulf %24, %2 : vector<4x4xf32>
    %cst_22 = arith.constant dense<0.000000e+00> : vector<4xf32>
    %26 = vector.multi_reduction <add>, %25, %cst_22 [1] : vector<4x4xf32> to vector<4xf32>
    %27 = vector.shape_cast %26 : vector<4xf32> to vector<4x1xf32>
    %28 = arith.addf %18, %22 : vector<1x4xf32>
    %29 = math.tanh %28 : vector<1x4xf32>
    %30 = arith.addf %19, %27 : vector<4x1xf32>
    %31 = math.tanh %30 : vector<4x1xf32>
    %32 = vector.shape_cast %31 : vector<4x1xf32> to vector<4x1xf32>
    %33 = vector.broadcast %32 : vector<4x1xf32> to vector<4x4xf32>
    %c1 = arith.constant 1 : index
    %c0_23 = arith.constant 0 : index
    %34 = vector.load %arg4[%c1, %c0_23] : memref<8x4xf32, #tpu.memory_space<vmem>>, vector<1x4xf32>
    %c0_24 = arith.constant 0 : index
    %c1_25 = arith.constant 1 : index
    %35 = vector.load %arg5[%c0_24, %c1_25] : memref<4x8xf32, #tpu.memory_space<vmem>>, vector<4x1xf32>
    %36 = arith.mulf %33, %1 : vector<4x4xf32>
    %cst_26 = arith.constant dense<0.000000e+00> : vector<4xf32>
    %37 = vector.multi_reduction <add>, %36, %cst_26 [0] : vector<4x4xf32> to vector<4xf32>
    %38 = vector.shape_cast %37 : vector<4xf32> to vector<1x4xf32>
    %39 = vector.shape_cast %29 : vector<1x4xf32> to vector<1x4xf32>
    %40 = vector.broadcast %39 : vector<1x4xf32> to vector<4x4xf32>
    %41 = arith.mulf %40, %2 : vector<4x4xf32>
    %cst_27 = arith.constant dense<0.000000e+00> : vector<4xf32>
    %42 = vector.multi_reduction <add>, %41, %cst_27 [1] : vector<4x4xf32> to vector<4xf32>
    %43 = vector.shape_cast %42 : vector<4xf32> to vector<4x1xf32>
    %44 = arith.addf %34, %38 : vector<1x4xf32>
    %45 = math.tanh %44 : vector<1x4xf32>
    %46 = arith.addf %35, %43 : vector<4x1xf32>
    %47 = math.tanh %46 : vector<4x1xf32>
    %48 = vector.shape_cast %47 : vector<4x1xf32> to vector<4x1xf32>
    %49 = vector.broadcast %48 : vector<4x1xf32> to vector<4x4xf32>
    %c2 = arith.constant 2 : index
    %c0_28 = arith.constant 0 : index
    %50 = vector.load %arg4[%c2, %c0_28] : memref<8x4xf32, #tpu.memory_space<vmem>>, vector<1x4xf32>
    %c0_29 = arith.constant 0 : index
    %c2_30 = arith.constant 2 : index
    %51 = vector.load %arg5[%c0_29, %c2_30] : memref<4x8xf32, #tpu.memory_space<vmem>>, vector<4x1xf32>
    %52 = arith.mulf %49, %1 : vector<4x4xf32>
    %cst_31 = arith.constant dense<0.000000e+00> : vector<4xf32>
    %53 = vector.multi_reduction <add>, %52, %cst_31 [0] : vector<4x4xf32> to vector<4xf32>
    %54 = vector.shape_cast %53 : vector<4xf32> to vector<1x4xf32>
    %55 = vector.shape_cast %45 : vector<1x4xf32> to vector<1x4xf32>
    %56 = vector.broadcast %55 : vector<1x4xf32> to vector<4x4xf32>
    %57 = arith.mulf %56, %2 : vector<4x4xf32>
    %cst_32 = arith.constant dense<0.000000e+00> : vector<4xf32>
    %58 = vector.multi_reduction <add>, %57, %cst_32 [1] : vector<4x4xf32> to vector<4xf32>
    %59 = vector.shape_cast %58 : vector<4xf32> to vector<4x1xf32>
    %60 = arith.addf %50, %54 : vector<1x4xf32>
    %61 = math.tanh %60 : vector<1x4xf32>
    %62 = arith.addf %51, %59 : vector<4x1xf32>
    %63 = math.tanh %62 : vector<4x1xf32>
    %64 = vector.shape_cast %63 : vector<4x1xf32> to vector<4x1xf32>
    %65 = vector.broadcast %64 : vector<4x1xf32> to vector<4x4xf32>
    %c3 = arith.constant 3 : index
    %c0_33 = arith.constant 0 : index
    %66 = vector.load %arg4[%c3, %c0_33] : memref<8x4xf32, #tpu.memory_space<vmem>>, vector<1x4xf32>
    %c0_34 = arith.constant 0 : index
    %c3_35 = arith.constant 3 : index
    %67 = vector.load %arg5[%c0_34, %c3_35] : memref<4x8xf32, #tpu.memory_space<vmem>>, vector<4x1xf32>
    %68 = arith.mulf %65, %1 : vector<4x4xf32>
    %cst_36 = arith.constant dense<0.000000e+00> : vector<4xf32>
    %69 = vector.multi_reduction <add>, %68, %cst_36 [0] : vector<4x4xf32> to vector<4xf32>
    %70 = vector.shape_cast %69 : vector<4xf32> to vector<1x4xf32>
    %71 = vector.shape_cast %61 : vector<1x4xf32> to vector<1x4xf32>
    %72 = vector.broadcast %71 : vector<1x4xf32> to vector<4x4xf32>
    %73 = arith.mulf %72, %2 : vector<4x4xf32>
    %cst_37 = arith.constant dense<0.000000e+00> : vector<4xf32>
    %74 = vector.multi_reduction <add>, %73, %cst_37 [1] : vector<4x4xf32> to vector<4xf32>
    %75 = vector.shape_cast %74 : vector<4xf32> to vector<4x1xf32>
    %76 = arith.addf %66, %70 : vector<1x4xf32>
    %77 = math.tanh %76 : vector<1x4xf32>
    %78 = arith.addf %67, %75 : vector<4x1xf32>
    %79 = math.tanh %78 : vector<4x1xf32>
    %80 = vector.shape_cast %79 : vector<4x1xf32> to vector<4x1xf32>
    %81 = vector.broadcast %80 : vector<4x1xf32> to vector<4x4xf32>
    %c4_38 = arith.constant 4 : index
    %c0_39 = arith.constant 0 : index
    %82 = vector.load %arg4[%c4_38, %c0_39] : memref<8x4xf32, #tpu.memory_space<vmem>>, vector<1x4xf32>
    %c0_40 = arith.constant 0 : index
    %c4_41 = arith.constant 4 : index
    %83 = vector.load %arg5[%c0_40, %c4_41] : memref<4x8xf32, #tpu.memory_space<vmem>>, vector<4x1xf32>
    %84 = arith.mulf %81, %1 : vector<4x4xf32>
    %cst_42 = arith.constant dense<0.000000e+00> : vector<4xf32>
    %85 = vector.multi_reduction <add>, %84, %cst_42 [0] : vector<4x4xf32> to vector<4xf32>
    %86 = vector.shape_cast %85 : vector<4xf32> to vector<1x4xf32>
    %87 = vector.shape_cast %77 : vector<1x4xf32> to vector<1x4xf32>
    %88 = vector.broadcast %87 : vector<1x4xf32> to vector<4x4xf32>
    %89 = arith.mulf %88, %2 : vector<4x4xf32>
    %cst_43 = arith.constant dense<0.000000e+00> : vector<4xf32>
    %90 = vector.multi_reduction <add>, %89, %cst_43 [1] : vector<4x4xf32> to vector<4xf32>
    %91 = vector.shape_cast %90 : vector<4xf32> to vector<4x1xf32>
    %92 = arith.addf %82, %86 : vector<1x4xf32>
    %93 = math.tanh %92 : vector<1x4xf32>
    %94 = arith.addf %83, %91 : vector<4x1xf32>
    %95 = math.tanh %94 : vector<4x1xf32>
    %96 = vector.shape_cast %95 : vector<4x1xf32> to vector<4x1xf32>
    %97 = vector.broadcast %96 : vector<4x1xf32> to vector<4x4xf32>
    %c5 = arith.constant 5 : index
    %c0_44 = arith.constant 0 : index
    %98 = vector.load %arg4[%c5, %c0_44] : memref<8x4xf32, #tpu.memory_space<vmem>>, vector<1x4xf32>
    %c0_45 = arith.constant 0 : index
    %c5_46 = arith.constant 5 : index
    %99 = vector.load %arg5[%c0_45, %c5_46] : memref<4x8xf32, #tpu.memory_space<vmem>>, vector<4x1xf32>
    %100 = arith.mulf %97, %1 : vector<4x4xf32>
    %cst_47 = arith.constant dense<0.000000e+00> : vector<4xf32>
    %101 = vector.multi_reduction <add>, %100, %cst_47 [0] : vector<4x4xf32> to vector<4xf32>
    %102 = vector.shape_cast %101 : vector<4xf32> to vector<1x4xf32>
    %103 = vector.shape_cast %93 : vector<1x4xf32> to vector<1x4xf32>
    %104 = vector.broadcast %103 : vector<1x4xf32> to vector<4x4xf32>
    %105 = arith.mulf %104, %2 : vector<4x4xf32>
    %cst_48 = arith.constant dense<0.000000e+00> : vector<4xf32>
    %106 = vector.multi_reduction <add>, %105, %cst_48 [1] : vector<4x4xf32> to vector<4xf32>
    %107 = vector.shape_cast %106 : vector<4xf32> to vector<4x1xf32>
    %108 = arith.addf %98, %102 : vector<1x4xf32>
    %109 = math.tanh %108 : vector<1x4xf32>
    %110 = arith.addf %99, %107 : vector<4x1xf32>
    %111 = math.tanh %110 : vector<4x1xf32>
    %112 = vector.shape_cast %111 : vector<4x1xf32> to vector<4x1xf32>
    %113 = vector.broadcast %112 : vector<4x1xf32> to vector<4x4xf32>
    %c6 = arith.constant 6 : index
    %c0_49 = arith.constant 0 : index
    %114 = vector.load %arg4[%c6, %c0_49] : memref<8x4xf32, #tpu.memory_space<vmem>>, vector<1x4xf32>
    %c0_50 = arith.constant 0 : index
    %c6_51 = arith.constant 6 : index
    %115 = vector.load %arg5[%c0_50, %c6_51] : memref<4x8xf32, #tpu.memory_space<vmem>>, vector<4x1xf32>
    %116 = arith.mulf %113, %1 : vector<4x4xf32>
    %cst_52 = arith.constant dense<0.000000e+00> : vector<4xf32>
    %117 = vector.multi_reduction <add>, %116, %cst_52 [0] : vector<4x4xf32> to vector<4xf32>
    %118 = vector.shape_cast %117 : vector<4xf32> to vector<1x4xf32>
    %119 = vector.shape_cast %109 : vector<1x4xf32> to vector<1x4xf32>
    %120 = vector.broadcast %119 : vector<1x4xf32> to vector<4x4xf32>
    %121 = arith.mulf %120, %2 : vector<4x4xf32>
    %cst_53 = arith.constant dense<0.000000e+00> : vector<4xf32>
    %122 = vector.multi_reduction <add>, %121, %cst_53 [1] : vector<4x4xf32> to vector<4xf32>
    %123 = vector.shape_cast %122 : vector<4xf32> to vector<4x1xf32>
    %124 = arith.addf %114, %118 : vector<1x4xf32>
    %125 = math.tanh %124 : vector<1x4xf32>
    %126 = arith.addf %115, %123 : vector<4x1xf32>
    %127 = math.tanh %126 : vector<4x1xf32>
    %128 = vector.shape_cast %127 : vector<4x1xf32> to vector<4x1xf32>
    %129 = vector.broadcast %128 : vector<4x1xf32> to vector<4x4xf32>
    %c7 = arith.constant 7 : index
    %c0_54 = arith.constant 0 : index
    %130 = vector.load %arg4[%c7, %c0_54] : memref<8x4xf32, #tpu.memory_space<vmem>>, vector<1x4xf32>
    %131 = arith.mulf %129, %1 : vector<4x4xf32>
    %cst_55 = arith.constant dense<0.000000e+00> : vector<4xf32>
    %132 = vector.multi_reduction <add>, %131, %cst_55 [0] : vector<4x4xf32> to vector<4xf32>
    %133 = vector.shape_cast %132 : vector<4xf32> to vector<1x4xf32>
    %134 = arith.addf %130, %133 : vector<1x4xf32>
    %135 = math.tanh %134 : vector<1x4xf32>
    %136 = tpu.concatenate %29, %45, %61, %77, %93, %109, %125, %135 in 0 : vector<1x4xf32>, vector<1x4xf32>, vector<1x4xf32>, vector<1x4xf32>, vector<1x4xf32>, vector<1x4xf32>, vector<1x4xf32>, vector<1x4xf32> -> vector<8x4xf32>
    %c0_56 = arith.constant 0 : index
    %c0_57 = arith.constant 0 : index
    %137 = vector.load %arg3[%c0_56, %c0_57] : memref<8x4xf32, #tpu.memory_space<vmem>>, vector<8x4xf32>
    tpu.vector_store %arg3[%c0_56, %c0_57], %136 {strides = array<i32>} : memref<8x4xf32, #tpu.memory_space<vmem>>, vector<8x4xf32>,
    return
  }
  func.func @transform_0(%arg0: i32) -> (i32, i32) {
    %c0_i32 = arith.constant 0 : i32
    %c0_i32_0 = arith.constant 0 : i32
    %c0_i32_1 = arith.constant 0 : i32
    return %c0_i32, %c0_i32_0 : i32, i32
  }
  func.func @transform_1(%arg0: i32) -> (i32, i32) {
    %c0_i32 = arith.constant 0 : i32
    %c0_i32_0 = arith.constant 0 : i32
    %c0_i32_1 = arith.constant 0 : i32
    return %c0_i32, %c0_i32_0 : i32, i32
  }
  func.func @transform_2(%arg0: i32) -> (i32, i32) {
    %c0_i32 = arith.constant 0 : i32
    %c0_i32_0 = arith.constant 0 : i32
    %c0_i32_1 = arith.constant 0 : i32
    return %c0_i32, %c0_i32_0 : i32, i32
  }
}

</mosaic_0001>

<llo_original>
// kernel: tpu_custom_call.1
$region0: #{tpu_custom_call.1}
  #allocation0 [shape = 'u32[]', space=smem, size = 0x4, offset = 0x4, fixed_abs, tag = 'smem constant byte address 0x4 - core index']
  #allocation1 [shape = 'u32[144,128]{1,0:T(1,128)}', space=vmem, size = 0x12000, scoped, tag = 'internal scratch']
  #allocation2 [shape = 'f32[8,4]{1,0:T(8,128)}', space=vmem, size = 0x1000, scoped, tag = 'scratch operand']
  #allocation3 [shape = 'f32[4,8]{1,0:T(4,128)}', space=vmem, size = 0x800, scoped, tag = 'scratch operand']
  %s0 = inlined_call_operand.vmem [shape: f32[12,8], index: 0, kind: input, shape index: {}]
  %s1 = inlined_call_operand.vmem [shape: f32[26,4], index: 1, kind: input, shape index: {}]
  %s2 = inlined_call_operand.vmem [shape: f32[8,4], index: 2, kind: output, shape index: {}]
  %s3 = sld [smem:[#allocation0]]
  $region18: #{tpu_custom_call.1} parent=0
    _
  %s5 = ssub.s32 1, %s3
  %s6 = scalar_select 0, %s5, %s3
  // Predicated region
  $region2: #{tpu_custom_call.1} parent=0 // pred_check
    _
  $region3: #{tpu_custom_call.1} parent=0 // pred_check_branch
    %8 = sbr.rel (0) target = $region5
  $region4: #{tpu_custom_call.1} parent=0 // pred_region
    _
  $region5: #{tpu_custom_call.1} parent=0 // pred_fallthru
    _
  // Predicated region
  $region6: #{tpu_custom_call.1} parent=0 // pred_check
    _
  $region7: #{tpu_custom_call.1} parent=0 // pred_check_branch
    %10 = sbr.rel (0) target = $region9
  $region8: #{tpu_custom_call.1} parent=0 // pred_region
    _
  $region9: #{tpu_custom_call.1} parent=0 // pred_fallthru
    _
  %v11 = vld [vmem:[%s1] sm:$0xf]
  %v12 = vld [vmem:[%s1 + $0xc] sm:$0xf]
  %v13 = vld [vmem:[%s1 + $0x8] sm:$0xf]
  %v14 = vld [vmem:[%s1 + $0x10] sm:$0x1]
  %v15 = vld [vmem:[%s0] sm:$0xff]
  %v16 = vlaneseq
  %v17 = vshrl.u32 %v16, 7
  %v18 = vsub.s32 0, %v17
  %v19 = vrot.slane %v14, %v18
  %vm20 = vcmask 31744
  %v22 = vsel %vm20, %v15, 0
  %vm24 = vcmask 1043456
  %v26 = vsel %vm24, %v11, 0
  %28 = vmatprep.subr.mxu0 0.0
  %29 = vmatpush1.msra.mxu0 %v26
  %30 = vmatprep.subr.mxu0 0.0
  %31 = vmatpush1.msra.mxu0 0.0
  %32 = vmatprep.subr.mxu0 0.0
  %33 = vmatpush1.msra.mxu0 0.0
  %34 = vmatprep.subr.mxu0 0.0
  %35 = vmatpush1.msra.mxu0 0.0
  %36 = vmatprep.subr.mxu0 0.0
  %37 = vmatpush1.msra.mxu0 0.0
  %38 = vmatprep.subr.mxu0 0.0
  %39 = vmatpush1.msra.mxu0 0.0
  %40 = vmatprep.subr.mxu0 0.0
  %41 = vmatpush1.msra.mxu0 0.0
  %42 = vmatprep.subr.mxu0 0.0
  %43 = vmatpush1.msra.mxu0 0.0
  %44 = vmatprep.subr.mxu0 0.0
  %45 = vmatpush1.msra.mxu0 0.0
  %46 = vmatprep.subr.mxu0 0.0
  %47 = vmatpush1.msra.mxu0 0.0
  %48 = vmatprep.subr.mxu0 0.0
  %49 = vmatpush1.msra.mxu0 0.0
  %50 = vmatprep.subr.mxu0 0.0
  %51 = vmatpush1.msra.mxu0 0.0
  %52 = vmatprep.subr.mxu0 0.0
  %53 = vmatpush1.msra.mxu0 0.0
  %54 = vmatprep.subr.mxu0 0.0
  %55 = vmatpush1.msra.mxu0 0.0
  %56 = vmatprep.subr.mxu0 0.0
  %57 = vmatpush1.msra.mxu0 0.0
  %58 = vmatprep.subr.mxu0 0.0
  %59 = vmatpush1.msra.mxu0 0.0
  %60 = vmatprep.subr.mxu0 0.0
  %61 = vmatpush1.msra.mxu0 0.0
  %62 = vmatprep.subr.mxu0 0.0
  %63 = vmatpush1.msra.mxu0 0.0
  %64 = vmatprep.subr.mxu0 0.0
  %65 = vmatpush1.msra.mxu0 0.0
  %66 = vmatprep.subr.mxu0 0.0
  %67 = vmatpush1.msra.mxu0 0.0
  %68 = vmatprep.subr.mxu0 0.0
  %69 = vmatpush1.msra.mxu0 0.0
  %70 = vmatprep.subr.mxu0 0.0
  %71 = vmatpush1.msra.mxu0 0.0
  %72 = vmatprep.subr.mxu0 0.0
  %73 = vmatpush1.msra.mxu0 0.0
  %74 = vmatprep.subr.mxu0 0.0
  %75 = vmatpush1.msra.mxu0 0.0
  %76 = vmatprep.subr.mxu0 0.0
  %77 = vmatpush1.msra.mxu0 0.0
  %78 = vmatprep.subr.mxu0 0.0
  %79 = vmatpush1.msra.mxu0 0.0
  %80 = vmatprep.subr.mxu0 0.0
  %81 = vmatpush1.msra.mxu0 0.0
  %82 = vmatprep.subr.mxu0 0.0
  %83 = vmatpush1.msra.mxu0 0.0
  %84 = vmatprep.subr.mxu0 0.0
  %85 = vmatpush1.msra.mxu0 0.0
  %86 = vmatprep.subr.mxu0 0.0
  %87 = vmatpush1.msra.mxu0 0.0
  %88 = vmatprep.subr.mxu0 0.0
  %89 = vmatpush1.msra.mxu0 0.0
  %90 = vmatprep.subr.mxu0 0.0
  %91 = vmatpush1.msra.mxu0 0.0
  %92 = vmatprep.mubr.f32.mxu0 0.0
  %93 = vmatmul.mubr.f32.gmra.mrb[0].mxu0 %v22
  %v94 = vpop.f32.mrb[0].mxu0
  %v95 = vadd.f32 %v19, %v94
  %v96 = vpop.f32.mrb[0].mxu0
  %97 = vdwg.mxu0
  %98 = vst.msk [vmem:[#allocation2] sm:$0xff] %vm20, %v95
  %v99 = vld [vmem:[%s1 + $0x4] sm:$0xf]
  %v100 = vld [vmem:[%s1 + $0x11] sm:$0xf]
  %v101 = vld [vmem:[%s0 + $0x8] sm:$0xf]
  %103 = vset.pattern.permute.xlu0 0
  %104 = vperm.xlu0 %103, %v100
  %v105 = vpop.permute.xlu0 %104
  %v108 = vsel %vm20, %v99, 0
  %v111 = vsel %vm24, %v101, 0
  %113 = vmatprep.subr.mxu0 0.0
  %114 = vmatpush1.msra.mxu0 %v111
  %115 = vmatprep.subr.mxu0 0.0
  %116 = vmatpush1.msra.mxu0 0.0
  %117 = vmatprep.subr.mxu0 0.0
  %118 = vmatpush1.msra.mxu0 0.0
  %119 = vmatprep.subr.mxu0 0.0
  %120 = vmatpush1.msra.mxu0 0.0
  %121 = vmatprep.subr.mxu0 0.0
  %122 = vmatpush1.msra.mxu0 0.0
  %123 = vmatprep.subr.mxu0 0.0
  %124 = vmatpush1.msra.mxu0 0.0
  %125 = vmatprep.subr.mxu0 0.0
  %126 = vmatpush1.msra.mxu0 0.0
  %127 = vmatprep.subr.mxu0 0.0
  %128 = vmatpush1.msra.mxu0 0.0
  %129 = vmatprep.subr.mxu0 0.0
  %130 = vmatpush1.msra.mxu0 0.0
  %131 = vmatprep.subr.mxu0 0.0
  %132 = vmatpush1.msra.mxu0 0.0
  %133 = vmatprep.subr.mxu0 0.0
  %134 = vmatpush1.msra.mxu0 0.0
  %135 = vmatprep.subr.mxu0 0.0
  %136 = vmatpush1.msra.mxu0 0.0
  %137 = vmatprep.subr.mxu0 0.0
  %138 = vmatpush1.msra.mxu0 0.0
  %139 = vmatprep.subr.mxu0 0.0
  %140 = vmatpush1.msra.mxu0 0.0
  %141 = vmatprep.subr.mxu0 0.0
  %142 = vmatpush1.msra.mxu0 0.0
  %143 = vmatprep.subr.mxu0 0.0
  %144 = vmatpush1.msra.mxu0 0.0
  %145 = vmatprep.subr.mxu0 0.0
  %146 = vmatpush1.msra.mxu0 0.0
  %147 = vmatprep.subr.mxu0 0.0
  %148 = vmatpush1.msra.mxu0 0.0
  %149 = vmatprep.subr.mxu0 0.0
  %150 = vmatpush1.msra.mxu0 0.0
  %151 = vmatprep.subr.mxu0 0.0
  %152 = vmatpush1.msra.mxu0 0.0
  %153 = vmatprep.subr.mxu0 0.0
  %154 = vmatpush1.msra.mxu0 0.0
  %155 = vmatprep.subr.mxu0 0.0
  %156 = vmatpush1.msra.mxu0 0.0
  %157 = vmatprep.subr.mxu0 0.0
  %158 = vmatpush1.msra.mxu0 0.0
  %159 = vmatprep.subr.mxu0 0.0
  %160 = vmatpush1.msra.mxu0 0.0
  %161 = vmatprep.subr.mxu0 0.0
  %162 = vmatpush1.msra.mxu0 0.0
  %163 = vmatprep.subr.mxu0 0.0
  %164 = vmatpush1.msra.mxu0 0.0
  %165 = vmatprep.subr.mxu0 0.0
  %166 = vmatpush1.msra.mxu0 0.0
  %167 = vmatprep.subr.mxu0 0.0
  %168 = vmatpush1.msra.mxu0 0.0
  %169 = vmatprep.subr.mxu0 0.0
  %170 = vmatpush1.msra.mxu0 0.0
  %171 = vmatprep.subr.mxu0 0.0
  %172 = vmatpush1.msra.mxu0 0.0
  %173 = vmatprep.subr.mxu0 0.0
  %174 = vmatpush1.msra.mxu0 0.0
  %175 = vmatprep.subr.mxu0 0.0
  %176 = vmatpush1.msra.mxu0 0.0
  %177 = vmatprep.mubr.f32.mxu0 0.0
  %178 = vmatmul.mubr.f32.gmra.mrb[0].mxu0 %v108
  %v179 = vpop.f32.mrb[0].mxu0
  %v180 = vadd.f32 %v105, %v179
  %v181 = vpop.f32.mrb[0].mxu0
  %182 = vdwg.mxu0
  %vm183 = vcmask 60416
  %184 = vst.msk [vmem:[#allocation3] sm:$0xf] %vm183, %v180
  %v185 = vld [vmem:[%s1 + $0x15] sm:$0x1]
  %v186 = vld [vmem:[%s1 + $0x16] sm:$0xf]
  %v187 = vld [vmem:[#allocation2] sm:$0x1]
  %v188 = vld [vmem:[#allocation3] sm:$0xf]
  %v189 = vmul.f32 %v186, %v12
  %vm190 = vcmask 27648
  %v191 = vsel %vm190, %v189, 0.0
  %v192 = vrot.slane %v191, 4
  %v193 = vadd.f32 %v191, %v192
  %v194 = vrot.slane %v193, 2
  %v195 = vadd.f32 %v193, %v194
  %v196 = vrot.slane %v195, 1
  %v197 = vadd.f32 %v195, %v196
  %v198 = vlaneseq
  %v199 = vshrl.u32 %v198, 7
  %v200 = vsub.s32 0, %v199
  %v201 = vrot.slane %v185, %v200
  %v202 = vmul.f32 %v201, %v13
  %v203 = vsel %vm190, %v202, 0.0
  %204 = vadd.xlane.f32.xlu0 %v203
  %v205 = vpop.xlane.xlu0 %204
  %v206 = vadd.f32 %v187, %v197
  %v207 = vtanh.pop %v206
  %v208 = vadd.f32 %v188, %v205
  %v209 = vtanh.pop %v208
  %211 = vset.pattern.permute.xlu0 0
  %212 = vperm.xlu0 %211, %v209
  %v213 = vpop.permute.xlu0 %212
  %v215 = vld [vmem:[#allocation2 + $0x1] sm:$0x1]
  %v216 = vmul.f32 %v213, %v12
  %v217 = vsel %vm190, %v216, 0.0
  %v218 = vrot.slane %v217, 4
  %v219 = vadd.f32 %v217, %v218
  %v220 = vrot.slane %v219, 2
  %v221 = vadd.f32 %v219, %v220
  %v222 = vrot.slane %v221, 1
  %v223 = vadd.f32 %v221, %v222
  %v224 = vlaneseq
  %v225 = vshrl.u32 %v224, 7
  %v226 = vsub.s32 0, %v225
  %v227 = vrot.slane %v207, %v226
  %v228 = vmul.f32 %v227, %v13
  %v229 = vsel %vm190, %v228, 0.0
  %230 = vadd.xlane.f32.xlu0 %v229
  %v231 = vpop.xlane.xlu0 %230
  %v232 = vadd.f32 %v215, %v223
  %v233 = vtanh.pop %v232
  %v234 = vadd.f32 %v188, %v231
  %v235 = vtanh.pop %v234
  %237 = vset.pattern.permute.xlu0 1
  %238 = vperm.xlu0 %237, %v235
  %v239 = vpop.permute.xlu0 %238
  %v241 = vld [vmem:[#allocation2 + $0x2] sm:$0x1]
  %v242 = vmul.f32 %v239, %v12
  %v243 = vsel %vm190, %v242, 0.0
  %v244 = vrot.slane %v243, 4
  %v245 = vadd.f32 %v243, %v244
  %v246 = vrot.slane %v245, 2
  %v247 = vadd.f32 %v245, %v246
  %v248 = vrot.slane %v247, 1
  %v249 = vadd.f32 %v247, %v248
  %v250 = vlaneseq
  %v251 = vshrl.u32 %v250, 7
  %v252 = vsub.s32 0, %v251
  %v253 = vrot.slane %v233, %v252
  %v254 = vmul.f32 %v253, %v13
  %v255 = vsel %vm190, %v254, 0.0
  %256 = vadd.xlane.f32.xlu0 %v255
  %v257 = vpop.xlane.xlu0 %256
  %v258 = vadd.f32 %v241, %v249
  %v259 = vtanh.pop %v258
  %v260 = vadd.f32 %v188, %v257
  %v261 = vtanh.pop %v260
  %263 = vset.pattern.permute.xlu0 2
  %264 = vperm.xlu0 %263, %v261
  %v265 = vpop.permute.xlu0 %264
  %v267 = vld [vmem:[#allocation2 + $0x3] sm:$0x1]
  %v268 = vmul.f32 %v265, %v12
  %v269 = vsel %vm190, %v268, 0.0
  %v270 = vrot.slane %v269, 4
  %v271 = vadd.f32 %v269, %v270
  %v272 = vrot.slane %v271, 2
  %v273 = vadd.f32 %v271, %v272
  %v274 = vrot.slane %v273, 1
  %v275 = vadd.f32 %v273, %v274
  %v276 = vlaneseq
  %v277 = vshrl.u32 %v276, 7
  %v278 = vsub.s32 0, %v277
  %v279 = vrot.slane %v259, %v278
  %v280 = vmul.f32 %v279, %v13
  %v281 = vsel %vm190, %v280, 0.0
  %282 = vadd.xlane.f32.xlu0 %v281
  %v283 = vpop.xlane.xlu0 %282
  %v284 = vadd.f32 %v267, %v275
  %v285 = vtanh.pop %v284
  %v286 = vadd.f32 %v188, %v283
  %v287 = vtanh.pop %v286
  %289 = vset.pattern.permute.xlu0 3
  %290 = vperm.xlu0 %289, %v287
  %v291 = vpop.permute.xlu0 %290
  %v293 = vld [vmem:[#allocation2 + $0x4] sm:$0x1]
  %v294 = vmul.f32 %v291, %v12
  %v295 = vsel %vm190, %v294, 0.0
  %v296 = vrot.slane %v295, 4
  %v297 = vadd.f32 %v295, %v296
  %v298 = vrot.slane %v297, 2
  %v299 = vadd.f32 %v297, %v298
  %v300 = vrot.slane %v299, 1
  %v301 = vadd.f32 %v299, %v300
  %v302 = vlaneseq
  %v303 = vshrl.u32 %v302, 7
  %v304 = vsub.s32 0, %v303
  %v305 = vrot.slane %v285, %v304
  %v306 = vmul.f32 %v305, %v13
  %v307 = vsel %vm190, %v306, 0.0
  %308 = vadd.xlane.f32.xlu0 %v307
  %v309 = vpop.xlane.xlu0 %308
  %v310 = vadd.f32 %v293, %v301
  %v311 = vtanh.pop %v310
  %v312 = vadd.f32 %v188, %v309
  %v313 = vtanh.pop %v312
  %315 = vset.pattern.permute.xlu0 4
  %316 = vperm.xlu0 %315, %v313
  %v317 = vpop.permute.xlu0 %316
  %v319 = vld [vmem:[#allocation2 + $0x5] sm:$0x1]
  %v320 = vmul.f32 %v317, %v12
  %v321 = vsel %vm190, %v320, 0.0
  %v322 = vrot.slane %v321, 4
  %v323 = vadd.f32 %v321, %v322
  %v324 = vrot.slane %v323, 2
  %v325 = vadd.f32 %v323, %v324
  %v326 = vrot.slane %v325, 1
  %v327 = vadd.f32 %v325, %v326
  %v328 = vlaneseq
  %v329 = vshrl.u32 %v328, 7
  %v330 = vsub.s32 0, %v329
  %v331 = vrot.slane %v311, %v330
  %v332 = vmul.f32 %v331, %v13
  %v333 = vsel %vm190, %v332, 0.0
  %334 = vadd.xlane.f32.xlu0 %v333
  %v335 = vpop.xlane.xlu0 %334
  %v336 = vadd.f32 %v319, %v327
  %v337 = vtanh.pop %v336
  %v338 = vadd.f32 %v188, %v335
  %v339 = vtanh.pop %v338
  %341 = vset.pattern.permute.xlu0 5
  %342 = vperm.xlu0 %341, %v339
  %v343 = vpop.permute.xlu0 %342
  %v345 = vld [vmem:[#allocation2 + $0x6] sm:$0x1]
  %v346 = vmul.f32 %v343, %v12
  %v347 = vsel %vm190, %v346, 0.0
  %v348 = vrot.slane %v347, 4
  %v349 = vadd.f32 %v347, %v348
  %v350 = vrot.slane %v349, 2
  %v351 = vadd.f32 %v349, %v350
  %v352 = vrot.slane %v351, 1
  %v353 = vadd.f32 %v351, %v352
  %v354 = vlaneseq
  %v355 = vshrl.u32 %v354, 7
  %v356 = vsub.s32 0, %v355
  %v357 = vrot.slane %v337, %v356
  %v358 = vmul.f32 %v357, %v13
  %v359 = vsel %vm190, %v358, 0.0
  %360 = vadd.xlane.f32.xlu0 %v359
  %v361 = vpop.xlane.xlu0 %360
  %v362 = vadd.f32 %v345, %v353
  %v363 = vtanh.pop %v362
  %v364 = vadd.f32 %v188, %v361
  %v365 = vtanh.pop %v364
  %367 = vset.pattern.permute.xlu0 6
  %368 = vperm.xlu0 %367, %v365
  %v369 = vpop.permute.xlu0 %368
  %v371 = vld [vmem:[#allocation2 + $0x7] sm:$0x1]
  %v372 = vmul.f32 %v369, %v12
  %v373 = vsel %vm190, %v372, 0.0
  %v374 = vrot.slane %v373, 4
  %v375 = vadd.f32 %v373, %v374
  %v376 = vrot.slane %v375, 2
  %v377 = vadd.f32 %v375, %v376
  %v378 = vrot.slane %v377, 1
  %v379 = vadd.f32 %v377, %v378
  %v380 = vadd.f32 %v371, %v379
  %v381 = vtanh.pop %v380
  %v383 = vrot.slane %v233, 7
  %v386 = vrot.slane %v259, 6
  %v389 = vrot.slane %v285, 5
  %v392 = vrot.slane %v311, 4
  %v395 = vrot.slane %v337, 3
  %v398 = vrot.slane %v363, 2
  %v401 = vrot.slane %v381, 1
  %vm403 = vcmask 1040384
  %v404 = vsel %vm403, %v207, %v383
  %vm405 = vcmask 1041408
  %v406 = vsel %vm405, %v404, %v386
  %vm407 = vcmask 1042432
  %v408 = vsel %vm407, %v406, %v389
  %v409 = vsel %vm24, %v408, %v392
  %vm410 = vcmask 1044480
  %v411 = vsel %vm410, %v409, %v395
  %vm412 = vcmask 1045504
  %v413 = vsel %vm412, %v411, %v398
  %vm414 = vcmask 1046528
  %v415 = vsel %vm414, %v413, %v401
  %416 = vst.msk [vmem:[%s2] sm:$0xff] %vm20, %v415
  // Predicated region
  $region10: #{tpu_custom_call.1} parent=0 // pred_check
    _
  $region11: #{tpu_custom_call.1} parent=0 // pred_check_branch
    %418 = sbr.rel (0) target = $region13
  $region12: #{tpu_custom_call.1} parent=0 // pred_region
    _
  $region13: #{tpu_custom_call.1} parent=0 // pred_fallthru
    _
  // Predicated region
  $region14: #{tpu_custom_call.1} parent=0 // pred_check
    _
  $region15: #{tpu_custom_call.1} parent=0 // pred_check_branch
    %420 = sbr.rel (0) target = $region17
  $region16: #{tpu_custom_call.1} parent=0 // pred_region
    _
  $region17: #{tpu_custom_call.1} parent=0 // pred_fallthru
    _

</llo_original>
